<compile_context>
chip_gen: v5e
topology: v5e:2x2
jax: 0.10.0
libtpu: 0.0.40
codegen_flags: <defaults>
</compile_context>

<pallas_src>
import functools

import jax
import jax.numpy as jnp
from jax.experimental import pallas as pl
from jax.experimental.pallas import tpu as pltpu


# Encoder geometry.  TODO(synk): LearnableEncoder is an external dependency; it is assumed
# to be a single Conv1d(1, dim, 400, stride=160, padding=200), consistent with
# CTCBlock.valid_length().
ENC_K, ENC_S, ENC_P = 400, 160, 200
HALO_ROWS = 8      # extra 160-sample audio rows fetched after each main time tile


def _make_ctc_kernel(*, dim, t1, t2, use_pds, t1_tile, h1_halo, compute_dtype):
    """Builds the fused CTCBlock kernel body.  All sizes are Python/static."""
    TF = t1_tile + h1_halo                       # encoder frames computed per tile
    T2F = t1_tile // 2 + (1 if use_pds else 0)   # downsample-1 frames computed per tile
    T3F = t1_tile // 4                           # downsample-2 frames per tile (pds only)

    def kernel(xa_ref, xb_ref, enc_w_ref, enc_b_ref, ds_w_ref, ds_b_ref, *rest):
        if use_pds:
            (pds_w_ref, pds_b_ref, fc_w_ref, fc_b_ref,
             o_ref, xwin_ref, h1_ref, h2_ref) = rest
        else:
            fc_w_ref, fc_b_ref, o_ref, xwin_ref, h1_ref = rest
            h2_ref = None

        tile = pl.program_id(1)

        # Stage the tile's audio window (main block + 8-row halo block) contiguously.
        xwin_ref[:t1_tile, :] = xa_ref[0]
        xwin_ref[t1_tile:t1_tile + HALO_ROWS, :] = xb_ref[0]

        # ---- encoder conv: Conv1d(1, dim, 400, stride=160, pad=200), in-kernel im2col ----
        # Frame (local) l, chunk j reads window rows [l + j], weight rows [j*160, j*160+160)
        # (rows >= 400 of the padded weight are zero, so no lane slicing is needed).
        h = jnp.zeros((TF, dim), jnp.float32)
        for j in range(3):
            xj = xwin_ref[pl.ds(j, TF), :]                      # (TF, 160)
            wj = enc_w_ref[pl.ds(j * ENC_S, ENC_S), :]          # (160, dim)
            h = h + jnp.dot(xj, wj, preferred_element_type=jnp.float32)
        h = h + enc_b_ref[...]
        # Zero frames outside [0, t1): the right tail of the last tile and the tile-0 left
        # halo.  This doubles as the stride-2 conv's zero padding for the next layer.
        f_glb = (tile * t1_tile - h1_halo) + jax.lax.broadcasted_iota(jnp.int32, (TF, 1), 0)
        h = h * ((f_glb >= 0) & (f_glb < t1)).astype(jnp.float32)
        h1_ref[:TF, :] = h

        def down(src_ref, n_out, w_ref, b_ref):
            # Conv1d(dim, dim, 3, stride=2, pad=1): out[v] = sum_k src[2v + k] @ W_k + b,
            # gathered with strided VMEM reads (no O(t^2) selection matmul), all three taps
            # folded into a single K=3*dim matmul.
            taps = [src_ref[pl.ds(k, n_out, stride=2), :].astype(compute_dtype)
                    for k in range(3)]
            hcat = jnp.concatenate(taps, axis=1)                # (n_out, 3*dim)
            return jnp.dot(hcat, w_ref[...], preferred_element_type=jnp.float32) + b_ref[...]

        # ---- downsampler(s) ----
        hds = down(h1_ref, T2F, ds_w_ref, ds_b_ref)
        if use_pds:
            u_glb = (tile * (t1_tile // 2) - 1) + jax.lax.broadcasted_iota(
                jnp.int32, (T2F, 1), 0)
            hds = hds * ((u_glb >= 0) & (u_glb < t2)).astype(jnp.float32)
            h2_ref[:T2F, :] = hds
            hds = down(h2_ref, T3F, pds_w_ref, pds_b_ref)

        # TODO(synk): ConformerBlock stack (external class, not provided in the source
        # module) is treated as identity.

        # ---- fc: Linear(dim, outdim), lane-padded to n_pad for a lane-dense store ----
        out = jnp.dot(hds.astype(compute_dtype), fc_w_ref[...],
                      preferred_element_type=jnp.float32) + fc_b_ref[...]
        o_ref[0] = out.astype(o_ref.dtype)

    return kernel


def init_ctc_params(key, config):
    dim, outdim = config["dim"], config["outdim"]
    ks = jax.random.split(key, 8)

    def uni(k, shape, fan_in):
        bound = float(fan_in) ** -0.5
        return jax.random.uniform(k, shape, jnp.float32, -bound, bound)

    params = {
        # LearnableEncoder (assumed Conv1d(1, dim, 400, stride=160, padding=200))
        "enc_w": uni(ks[0], (dim, 1, ENC_K), 1 * ENC_K),
        "enc_b": uni(ks[1], (dim,), 1 * ENC_K),
        # DownSample: Conv1d(dim, dim, 3, stride=2, padding=1)
        "ds_w": uni(ks[2], (dim, dim, 3), dim * 3),
        "ds_b": uni(ks[3], (dim,), dim * 3),
        # fc: Linear(dim, outdim), stored in matmul layout (dim, outdim)
        "fc_w": uni(ks[6], (dim, outdim), dim),
        "fc_b": uni(ks[7], (outdim,), dim),
    }
    if config["downsample"] == 4:
        params["pds_w"] = uni(ks[4], (dim, dim, 3), dim * 3)
        params["pds_b"] = uni(ks[5], (dim,), dim * 3)
    return params


def ctc_block_forward(params, x, config, *, t1_tile=256, use_bf16=True):
    dim, outdim = config["dim"], config["outdim"]
    use_pds = config["downsample"] == 4

    if x.ndim == 3:                        # (B, T, 1) -> (B, T)
        x = x[..., 0]
    B, T = x.shape

    # ----- static conv geometry -----
    t1 = (T + 2 * ENC_P - ENC_K) // ENC_S + 1            # encoder output frames
    t2 = (t1 - 1) // 2 + 1                               # after downsampler
    t3 = (t2 - 1) // 2 + 1                               # after optional post-downsampler
    t_out = t3 if use_pds else t2

    # Time tiling: t1_tile encoder frames per grid step (multiple of 32 so that both
    # downsampled tile sizes stay sublane-aligned); halo frames are recomputed per tile.
    t1_tile = max(32, (int(t1_tile) // 32) * 32)
    h1_halo = 3 if use_pds else 1
    t_out_tile = t1_tile // 4 if use_pds else t1_tile // 2
    n_tiles = max(1, -(-t_out // t_out_tile))
    rows_total = n_tiles * t1_tile + HALO_ROWS

    cdt = jnp.bfloat16 if use_bf16 else jnp.float32
    out_dtype = jnp.bfloat16 if use_bf16 else jnp.float32

    # Zero-pad (left: conv pad + halo rows, right: up to a whole number of tiles) and view
    # as 160-sample rows.  The reshape is contiguous -> no im2col expansion in HBM.
    # TODO(synk): fold this pad into the kernel (masked edge chunks) to remove the one
    # extra XLA pass over the raw audio.
    left = ENC_P + h1_halo * ENC_S
    right = rows_total * ENC_S - left - T
    assert right >= 0
    x_rows = jnp.pad(x.astype(cdt), ((0, 0), (left, right))).reshape(B, rows_total, ENC_S)

    # ----- weights in (frames x channels) matmul layout; operands in compute dtype -----
    enc_w = jnp.transpose(params["enc_w"][:, 0, :], (1, 0))                    # (400, dim)
    enc_w = jnp.pad(enc_w, ((0, 3 * ENC_S - ENC_K), (0, 0))).astype(cdt)       # (480, dim)
    enc_b = params["enc_b"].reshape(1, dim).astype(jnp.float32)
    ds_w = jnp.transpose(params["ds_w"], (2, 1, 0)).reshape(3 * dim, dim).astype(cdt)
    ds_b = params["ds_b"].reshape(1, dim).astype(jnp.float32)

    n_pad = max(128, ((outdim + 127) // 128) * 128)       # lane-dense output width
    fc_w = jnp.zeros((dim, n_pad), cdt).at[:, :outdim].set(params["fc_w"].astype(cdt))
    fc_b = jnp.zeros((1, n_pad), jnp.float32).at[0, :outdim].set(
        params["fc_b"].astype(jnp.float32))

    def const(shape):
        return pl.BlockSpec(shape, lambda b, t: (0,) * len(shape))

    args = [x_rows, x_rows, enc_w, enc_b, ds_w, ds_b]
    in_specs = [
        pl.BlockSpec((1, t1_tile, ENC_S), lambda b, t: (b, t, 0)),
        pl.BlockSpec((1, HALO_ROWS, ENC_S),
                     lambda b, t: (b, (t + 1) * (t1_tile // HALO_ROWS), 0)),
        const((3 * ENC_S, dim)), const((1, dim)),
        const((3 * dim, dim)), const((1, dim)),
    ]
    if use_pds:
        pds_w = jnp.transpose(params["pds_w"], (2, 1, 0)).reshape(3 * dim, dim).astype(cdt)
        pds_b = params["pds_b"].reshape(1, dim).astype(jnp.float32)
        args += [pds_w, pds_b]
        in_specs += [const((3 * dim, dim)), const((1, dim))]
    args += [fc_w, fc_b]
    in_specs += [const((dim, n_pad)), const((1, n_pad))]

    scratch_shapes = [pltpu.VMEM((t1_tile + HALO_ROWS, ENC_S), cdt),
                      pltpu.VMEM((t1_tile + HALO_ROWS, dim), jnp.float32)]
    if use_pds:
        scratch_shapes.append(pltpu.VMEM((t1_tile // 2 + HALO_ROWS, dim), jnp.float32))

    # VMEM budget derived from the chip (v5e/v6e: 128 MiB physical -> 96 MiB; v7x: 64 -> 48).
    try:
        cap = int(pltpu.get_tpu_info().vmem_capacity_bytes)
        vmem_limit = min((cap * 3) // 4, 96 * 1024 * 1024)
    except Exception:
        vmem_limit = 64 * 1024 * 1024

    kernel = _make_ctc_kernel(dim=dim, t1=t1, t2=t2, use_pds=use_pds, t1_tile=t1_tile,
                              h1_halo=h1_halo, compute_dtype=cdt)

    out = pl.pallas_call(
        kernel,
        out_shape=jax.ShapeDtypeStruct((B, n_tiles * t_out_tile, n_pad), out_dtype),
        grid=(B, n_tiles),
        in_specs=in_specs,
        out_specs=pl.BlockSpec((1, t_out_tile, n_pad), lambda b, t: (b, t, 0)),
        scratch_shapes=scratch_shapes,
        compiler_params=pltpu.CompilerParams(
            dimension_semantics=("parallel", "parallel"),
            vmem_limit_bytes=int(vmem_limit),
        ),
    )(*args)
    return out[:, :t_out, :outdim]        # drop time/lane padding once, in XLA


def ctc_block_reference(params, x, config):
    """Plain-JAX/XLA reference of the same math (for validation only)."""
    if x.ndim == 3:
        x = x[..., 0]
    y = x.astype(jnp.float32)[:, None, :]                 # (B, 1, T), NCW

    def conv1d(inp, w, b, stride, pad):
        out = jax.lax.conv_general_dilated(
            inp, w, window_strides=(stride,), padding=[(pad, pad)],
            dimension_numbers=("NCH", "OIH", "NCH"),
            precision=jax.lax.Precision.HIGHEST)
        return out + b[None, :, None]

    y = conv1d(y, params["enc_w"], params["enc_b"], ENC_S, ENC_P)
    y = conv1d(y, params["ds_w"], params["ds_b"], 2, 1)
    if config["downsample"] == 4:
        y = conv1d(y, params["pds_w"], params["pds_b"], 2, 1)
    y = jnp.transpose(y, (0, 2, 1))                       # 'b c t -> b t c'
    return jnp.matmul(y, params["fc_w"],
                      precision=jax.lax.Precision.HIGHEST) + params["fc_b"]


if __name__ == "__main__":
    key = jax.random.PRNGKey(0)
    pkey, xkey = jax.random.split(key)

    # (T_samples, t1_tile): the long input exercises several time tiles per batch element
    # (halo recompute + cross-tile masking); the short one exercises a single, mostly
    # padded tile.  Production shapes would use a much larger t1_tile.
    cases = [(16000, 32), (1600, 32)]

    for downsample in (2, 4):
        config = dict(dim=32, num_heads=4, ffn_dim=128, num_layers=1,
                      kernel_size=31, dropout=0.0, downsample=downsample, outdim=16)
        params = init_ctc_params(pkey, config)

        for T, tile in cases:
            x = jax.random.normal(xkey, (2, T), jnp.float32)
            y_ref = ctc_block_reference(params, x, config)
            scale = float(jnp.max(jnp.abs(y_ref))) + 1e-6

            # f32 path: tightened tolerance (verifies the tiling / strided-gather math).
            fwd_f32 = jax.jit(functools.partial(ctc_block_forward, config=config,
                                                t1_tile=tile, use_bf16=False))
            y32 = jax.block_until_ready(fwd_f32(params, x))
            assert y32.shape == y_ref.shape, (y32.shape, y_ref.shape)
            assert bool(jnp.all(jnp.isfinite(y32)))
            err = float(jnp.max(jnp.abs(y32.astype(jnp.float32) - y_ref)))
            assert err <= 2e-4 * scale, ("f32", downsample, T, err, scale)

            # bf16-operand / f32-accumulate path: bf16-level tolerance.
            fwd_bf16 = jax.jit(functools.partial(ctc_block_forward, config=config,
                                                 t1_tile=tile, use_bf16=True))
            y16 = jax.block_until_ready(fwd_bf16(params, x))
            assert y16.shape == y_ref.shape, (y16.shape, y_ref.shape)
            err = float(jnp.max(jnp.abs(y16.astype(jnp.float32) - y_ref)))
            assert err <= 2e-2 * scale, ("bf16", downsample, T, err, scale)

    print("KERNEL_OK")
</pallas_src>

<mosaic_0001>
module attributes {stable_mosaic.version = 11 : i64} {
  func.func @kernel(%arg0: i32, %arg1: i32, %arg2: memref<1x32x160xf32, #tpu.memory_space<vmem>>, %arg3: memref<1x8x160xf32, #tpu.memory_space<vmem>>, %arg4: memref<480x32xf32, #tpu.memory_space<vmem>>, %arg5: memref<1x32xf32, #tpu.memory_space<vmem>>, %arg6: memref<96x32xf32, #tpu.memory_space<vmem>>, %arg7: memref<1x32xf32, #tpu.memory_space<vmem>>, %arg8: memref<32x128xf32, #tpu.memory_space<vmem>>, %arg9: memref<1x128xf32, #tpu.memory_space<vmem>>, %arg10: memref<1x16x128xf32, #tpu.memory_space<vmem>>, %arg11: memref<40x160xf32, #tpu.memory_space<vmem>>, %arg12: memref<40x32xf32, #tpu.memory_space<vmem>>) attributes {dimension_semantics = [#tpu.dimension_semantics<parallel>, #tpu.dimension_semantics<parallel>], iteration_bounds = array<i64: 2, 4>, scalar_prefetch = 0 : i64, scratch_operands = 2 : i64, tpu.core_type = #tpu.core_type<tc>, window_params = [{transform_indices = @transform_0, window_bounds = array<i64: 1, 32, 160>}, {transform_indices = @transform_1, window_bounds = array<i64: 1, 8, 160>}, {pipeline_mode = #tpu.pipeline_mode<synchronous>, transform_indices = @transform_2, window_bounds = array<i64: 480, 32>}, {pipeline_mode = #tpu.pipeline_mode<synchronous>, transform_indices = @transform_3, window_bounds = array<i64: 1, 32>}, {pipeline_mode = #tpu.pipeline_mode<synchronous>, transform_indices = @transform_4, window_bounds = array<i64: 96, 32>}, {pipeline_mode = #tpu.pipeline_mode<synchronous>, transform_indices = @transform_5, window_bounds = array<i64: 1, 32>}, {pipeline_mode = #tpu.pipeline_mode<synchronous>, transform_indices = @transform_6, window_bounds = array<i64: 32, 128>}, {pipeline_mode = #tpu.pipeline_mode<synchronous>, transform_indices = @transform_7, window_bounds = array<i64: 1, 128>}, {transform_indices = @transform_8, window_bounds = array<i64: 1, 16, 128>}]} {
    %c0 = arith.constant 0 : index
    %c0_0 = arith.constant 0 : index
    %c0_1 = arith.constant 0 : index
    %0 = vector.load %arg2[%c0, %c0_0, %c0_1] : memref<1x32x160xf32, #tpu.memory_space<vmem>>, vector<1x32x160xf32>
    %1 = vector.shape_cast %0 : vector<1x32x160xf32> to vector<32x160xf32>
    %c0_2 = arith.constant 0 : index
    %c0_3 = arith.constant 0 : index
    %2 = vector.load %arg11[%c0_2, %c0_3] : memref<40x160xf32, #tpu.memory_space<vmem>>, vector<32x160xf32>
    tpu.vector_store %arg11[%c0_2, %c0_3], %1 {strides = array<i32>} : memref<40x160xf32, #tpu.memory_space<vmem>>, vector<32x160xf32>,
    %c0_4 = arith.constant 0 : index
    %c0_5 = arith.constant 0 : index
    %c0_6 = arith.constant 0 : index
    %3 = vector.load %arg3[%c0_4, %c0_5, %c0_6] : memref<1x8x160xf32, #tpu.memory_space<vmem>>, vector<1x8x160xf32>
    %4 = vector.shape_cast %3 : vector<1x8x160xf32> to vector<8x160xf32>
    %c32 = arith.constant 32 : index
    %c0_7 = arith.constant 0 : index
    %5 = vector.load %arg11[%c32, %c0_7] : memref<40x160xf32, #tpu.memory_space<vmem>>, vector<8x160xf32>
    tpu.vector_store %arg11[%c32, %c0_7], %4 {strides = array<i32>} : memref<40x160xf32, #tpu.memory_space<vmem>>, vector<8x160xf32>,
    %cst = arith.constant 0.000000e+00 : f32
    %6 = vector.broadcast %cst : f32 to vector<33x32xf32>
    %c0_8 = arith.constant 0 : index
    %c0_9 = arith.constant 0 : index
    %7 = vector.load %arg11[%c0_8, %c0_9] : memref<40x160xf32, #tpu.memory_space<vmem>>, vector<33x160xf32>
    %c0_10 = arith.constant 0 : index
    %c0_11 = arith.constant 0 : index
    %8 = vector.load %arg4[%c0_10, %c0_11] : memref<480x32xf32, #tpu.memory_space<vmem>>, vector<160x32xf32>
    %cst_12 = arith.constant dense<0.000000e+00> : vector<33x32xf32>
    %9 = tpu.matmul %7, %8, %cst_12 {dimension_numbers = #tpu.dot_dimension_numbers<[1], [0], [0], [1], [0, 0, 1, 1], [], []>} : vector<33x160xf32>, vector<160x32xf32>, vector<33x32xf32> -> vector<33x32xf32>
    %10 = arith.addf %6, %9 : vector<33x32xf32>
    %c1 = arith.constant 1 : index
    %c0_13 = arith.constant 0 : index
    %11 = vector.load %arg11[%c1, %c0_13] : memref<40x160xf32, #tpu.memory_space<vmem>>, vector<33x160xf32>
    %c160 = arith.constant 160 : index
    %c0_14 = arith.constant 0 : index
    %12 = vector.load %arg4[%c160, %c0_14] : memref<480x32xf32, #tpu.memory_space<vmem>>, vector<160x32xf32>
    %cst_15 = arith.constant dense<0.000000e+00> : vector<33x32xf32>
    %13 = tpu.matmul %11, %12, %cst_15 {dimension_numbers = #tpu.dot_dimension_numbers<[1], [0], [0], [1], [0, 0, 1, 1], [], []>} : vector<33x160xf32>, vector<160x32xf32>, vector<33x32xf32> -> vector<33x32xf32>
    %14 = arith.addf %10, %13 : vector<33x32xf32>
    %c2 = arith.constant 2 : index
    %c0_16 = arith.constant 0 : index
    %15 = vector.load %arg11[%c2, %c0_16] : memref<40x160xf32, #tpu.memory_space<vmem>>, vector<33x160xf32>
    %c320 = arith.constant 320 : index
    %c0_17 = arith.constant 0 : index
    %16 = vector.load %arg4[%c320, %c0_17] : memref<480x32xf32, #tpu.memory_space<vmem>>, vector<160x32xf32>
    %cst_18 = arith.constant dense<0.000000e+00> : vector<33x32xf32>
    %17 = tpu.matmul %15, %16, %cst_18 {dimension_numbers = #tpu.dot_dimension_numbers<[1], [0], [0], [1], [0, 0, 1, 1], [], []>} : vector<33x160xf32>, vector<160x32xf32>, vector<33x32xf32> -> vector<33x32xf32>
    %18 = arith.addf %14, %17 : vector<33x32xf32>
    %c0_19 = arith.constant 0 : index
    %c0_20 = arith.constant 0 : index
    %19 = vector.load %arg5[%c0_19, %c0_20] : memref<1x32xf32, #tpu.memory_space<vmem>>, vector<1x32xf32>
    %20 = vector.broadcast %19 : vector<1x32xf32> to vector<33x32xf32>
    %21 = arith.addf %18, %20 : vector<33x32xf32>
    %c32_i32 = arith.constant 32 : i32
    %22 = arith.muli %arg1, %c32_i32 : i32
    %c1_i32 = arith.constant 1 : i32
    %23 = arith.subi %22, %c1_i32 : i32
    %24 = tpu.iota {dimensions = array<i32: 0>} : vector<33x1xi32>
    %25 = vector.broadcast %23 : i32 to vector<33x1xi32>
    %26 = arith.addi %25, %24 : vector<33x1xi32>
    %c0_i32 = arith.constant 0 : i32
    %27 = vector.broadcast %c0_i32 : i32 to vector<33x1xi32>
    %28 = arith.cmpi sge, %26, %27 : vector<33x1xi32>
    %c101_i32 = arith.constant 101 : i32
    %29 = vector.broadcast %c101_i32 : i32 to vector<33x1xi32>
    %30 = arith.cmpi slt, %26, %29 : vector<33x1xi32>
    %31 = arith.andi %28, %30 : vector<33x1xi1>
    %32 = arith.extui %31 : vector<33x1xi1> to vector<33x1xi32>
    %33 = arith.sitofp %32 : vector<33x1xi32> to vector<33x1xf32>
    %34 = vector.broadcast %33 : vector<33x1xf32> to vector<33x32xf32>
    %35 = arith.mulf %21, %34 : vector<33x32xf32>
    %c0_21 = arith.constant 0 : index
    %c0_22 = arith.constant 0 : index
    %36 = vector.load %arg12[%c0_21, %c0_22] : memref<40x32xf32, #tpu.memory_space<vmem>>, vector<33x32xf32>
    tpu.vector_store %arg12[%c0_21, %c0_22], %35 {strides = array<i32>} : memref<40x32xf32, #tpu.memory_space<vmem>>, vector<33x32xf32>,
    %c0_23 = arith.constant 0 : index
    %c0_24 = arith.constant 0 : index
    %37 = tpu.strided_load %arg12[%c0_23, %c0_24] {strides = array<i32: 2, 1>} : memref<40x32xf32, #tpu.memory_space<vmem>>, vector<16x32xf32>
    %c1_25 = arith.constant 1 : index
    %c0_26 = arith.constant 0 : index
    %38 = tpu.strided_load %arg12[%c1_25, %c0_26] {strides = array<i32: 2, 1>} : memref<40x32xf32, #tpu.memory_space<vmem>>, vector<16x32xf32>
    %c2_27 = arith.constant 2 : index
    %c0_28 = arith.constant 0 : index
    %39 = tpu.strided_load %arg12[%c2_27, %c0_28] {strides = array<i32: 2, 1>} : memref<40x32xf32, #tpu.memory_space<vmem>>, vector<16x32xf32>
    %40 = tpu.concatenate %37, %38, %39 in 1 : vector<16x32xf32>, vector<16x32xf32>, vector<16x32xf32> -> vector<16x96xf32>
    %c0_29 = arith.constant 0 : index
    %c0_30 = arith.constant 0 : index
    %41 = vector.load %arg6[%c0_29, %c0_30] : memref<96x32xf32, #tpu.memory_space<vmem>>, vector<96x32xf32>
    %cst_31 = arith.constant dense<0.000000e+00> : vector<16x32xf32>
    %42 = tpu.matmul %40, %41, %cst_31 {dimension_numbers = #tpu.dot_dimension_numbers<[1], [0], [0], [1], [0, 0, 1, 1], [], []>} : vector<16x96xf32>, vector<96x32xf32>, vector<16x32xf32> -> vector<16x32xf32>
    %c0_32 = arith.constant 0 : index
    %c0_33 = arith.constant 0 : index
    %43 = vector.load %arg7[%c0_32, %c0_33] : memref<1x32xf32, #tpu.memory_space<vmem>>, vector<1x32xf32>
    %44 = vector.broadcast %43 : vector<1x32xf32> to vector<16x32xf32>
    %45 = arith.addf %42, %44 : vector<16x32xf32>
    %c0_34 = arith.constant 0 : index
    %c0_35 = arith.constant 0 : index
    %46 = vector.load %arg8[%c0_34, %c0_35] : memref<32x128xf32, #tpu.memory_space<vmem>>, vector<32x128xf32>
    %cst_36 = arith.constant dense<0.000000e+00> : vector<16x128xf32>
    %47 = tpu.matmul %45, %46, %cst_36 {dimension_numbers = #tpu.dot_dimension_numbers<[1], [0], [0], [1], [0, 0, 1, 1], [], []>} : vector<16x32xf32>, vector<32x128xf32>, vector<16x128xf32> -> vector<16x128xf32>
    %c0_37 = arith.constant 0 : index
    %c0_38 = arith.constant 0 : index
    %48 = vector.load %arg9[%c0_37, %c0_38] : memref<1x128xf32, #tpu.memory_space<vmem>>, vector<1x128xf32>
    %49 = vector.broadcast %48 : vector<1x128xf32> to vector<16x128xf32>
    %50 = arith.addf %47, %49 : vector<16x128xf32>
    %c0_39 = arith.constant 0 : index
    %c0_40 = arith.constant 0 : index
    %c0_41 = arith.constant 0 : index
    %51 = vector.load %arg10[%c0_39, %c0_40, %c0_41] : memref<1x16x128xf32, #tpu.memory_space<vmem>>, vector<1x16x128xf32>
    %52 = vector.shape_cast %51 : vector<1x16x128xf32> to vector<16x128xf32>
    %53 = vector.shape_cast %50 : vector<16x128xf32> to vector<1x16x128xf32>
    tpu.vector_store %arg10[%c0_39, %c0_40, %c0_41], %53 {strides = array<i32>} : memref<1x16x128xf32, #tpu.memory_space<vmem>>, vector<1x16x128xf32>,
    return
  }
  func.func @transform_0(%arg0: i32, %arg1: i32) -> (i32, i32, i32) {
    %c0_i32 = arith.constant 0 : i32
    %c0_i32_0 = arith.constant 0 : i32
    return %arg0, %arg1, %c0_i32 : i32, i32, i32
  }
  func.func @transform_1(%arg0: i32, %arg1: i32) -> (i32, i32, i32) {
    %c1_i32 = arith.constant 1 : i32
    %0 = arith.addi %arg1, %c1_i32 : i32
    %c4_i32 = arith.constant 4 : i32
    %1 = arith.muli %0, %c4_i32 : i32
    %c0_i32 = arith.constant 0 : i32
    %c0_i32_0 = arith.constant 0 : i32
    return %arg0, %1, %c0_i32 : i32, i32, i32
  }
  func.func @transform_2(%arg0: i32, %arg1: i32) -> (i32, i32) {
    %c0_i32 = arith.constant 0 : i32
    %c0_i32_0 = arith.constant 0 : i32
    %c0_i32_1 = arith.constant 0 : i32
    return %c0_i32, %c0_i32_0 : i32, i32
  }
  func.func @transform_3(%arg0: i32, %arg1: i32) -> (i32, i32) {
    %c0_i32 = arith.constant 0 : i32
    %c0_i32_0 = arith.constant 0 : i32
    %c0_i32_1 = arith.constant 0 : i32
    return %c0_i32, %c0_i32_0 : i32, i32
  }
  func.func @transform_4(%arg0: i32, %arg1: i32) -> (i32, i32) {
    %c0_i32 = arith.constant 0 : i32
    %c0_i32_0 = arith.constant 0 : i32
    %c0_i32_1 = arith.constant 0 : i32
    return %c0_i32, %c0_i32_0 : i32, i32
  }
  func.func @transform_5(%arg0: i32, %arg1: i32) -> (i32, i32) {
    %c0_i32 = arith.constant 0 : i32
    %c0_i32_0 = arith.constant 0 : i32
    %c0_i32_1 = arith.constant 0 : i32
    return %c0_i32, %c0_i32_0 : i32, i32
  }
  func.func @transform_6(%arg0: i32, %arg1: i32) -> (i32, i32) {
    %c0_i32 = arith.constant 0 : i32
    %c0_i32_0 = arith.constant 0 : i32
    %c0_i32_1 = arith.constant 0 : i32
    return %c0_i32, %c0_i32_0 : i32, i32
  }
  func.func @transform_7(%arg0: i32, %arg1: i32) -> (i32, i32) {
    %c0_i32 = arith.constant 0 : i32
    %c0_i32_0 = arith.constant 0 : i32
    %c0_i32_1 = arith.constant 0 : i32
    return %c0_i32, %c0_i32_0 : i32, i32
  }
  func.func @transform_8(%arg0: i32, %arg1: i32) -> (i32, i32, i32) {
    %c0_i32 = arith.constant 0 : i32
    %c0_i32_0 = arith.constant 0 : i32
    return %arg0, %arg1, %c0_i32 : i32, i32, i32
  }
}

</mosaic_0001>

<llo_original>
// kernel: ctc_block_forward.1
$region0: #{ctc_block_forward.1}
  #allocation0 [shape = 'u32[]', space=smem, size = 0x4, offset = 0x4, fixed_abs, tag = 'smem constant byte address 0x4 - core index']
  #allocation1 [shape = 'u32[72,128]{1,0:T(1,128)}', space=vmem, size = 0x9000, scoped, tag = 'internal scratch']
  #allocation2 [shape = 'f32[40,160]{1,0:T(8,128)}', space=vmem, size = 0xa000, scoped, tag = 'scratch operand']
  #allocation3 [shape = 'f32[40,32]{1,0:T(8,128)}', space=vmem, size = 0x5000, scoped, tag = 'scratch operand']
  %s0 = inlined_call_operand.vmem [shape: f32[2,136,160], index: 0, kind: input, shape index: {}, may-alias: {0,1}]
  %s1 = inlined_call_operand.vmem [shape: f32[2,136,160], index: 1, kind: input, shape index: {}, may-alias: {0,1}]
  %s2 = inlined_call_operand.vmem [shape: f32[480,32], index: 2, kind: input, shape index: {}]
  %s3 = inlined_call_operand.vmem [shape: f32[1,32], index: 3, kind: input, shape index: {}]
  %s4 = inlined_call_operand.vmem [shape: f32[96,32], index: 4, kind: input, shape index: {}]
  %s5 = inlined_call_operand.vmem [shape: f32[1,32], index: 5, kind: input, shape index: {}]
  %s6 = inlined_call_operand.vmem [shape: f32[32,128], index: 6, kind: input, shape index: {}]
  %s7 = inlined_call_operand.vmem [shape: f32[1,128], index: 7, kind: input, shape index: {}]
  %s8 = inlined_call_operand.vmem [shape: f32[2,64,128], index: 8, kind: output, shape index: {}]
  %s9 = sld [smem:[#allocation0]]
  $region65: #{ctc_block_forward.1} parent=0
    _
  %s11 = ssub.s32 1, %s9
  %s12 = scalar_select 0, %s11, %s9
  loop: start=0, step=1, limit=10
  $region2: #{ctc_block_forward.1} parent=0 // loop_pre_header
    _
  $region3: #{ctc_block_forward.1} parent=0 // loop_header
    %s14 = sphi 0, %s18
    %p15 = scmp.ge.s32.totalorder %s14, 10
    %s21 = sphi 0, %s33
    %s22 = sphi 0, %s29
    %s23 = sphi 0, %s21
    %s24 = sphi 0, %s22
    %s25 = sphi 0, %s23
    %s26 = sphi 0, %s24
    %s38 = sphi 0, %s40
    %s41 = sphi 0, %s38
    %s42 = sphi 0, %s41
    %s58 = sphi 0, %s42
    %s70 = sphi 0, %s72
    %s73 = sphi 0, %s70
    %s74 = sphi 0, %s73
    %s90 = sphi 0, %s74
    %s94 = sphi 0, %s94
    %s96 = sphi 0, %s94
    %s97 = sphi 0, %s96
    %s111 = sphi 0, %s97
    %s115 = sphi 0, %s115
    %s117 = sphi 0, %s115
    %s118 = sphi 0, %s117
    %s132 = sphi 0, %s118
    %s136 = sphi 0, %s136
    %s138 = sphi 0, %s136
    %s139 = sphi 0, %s138
    %s153 = sphi 0, %s139
    %s157 = sphi 0, %s157
    %s159 = sphi 0, %s157
    %s160 = sphi 0, %s159
    %s174 = sphi 0, %s160
    %s178 = sphi 0, %s178
    %s180 = sphi 0, %s178
    %s181 = sphi 0, %s180
    %s195 = sphi 0, %s181
    %s199 = sphi 0, %s199
    %s201 = sphi 0, %s199
    %s202 = sphi 0, %s201
    %s216 = sphi 0, %s202
    %s224 = sphi 0, %s226
    %s227 = sphi 0, %s224
    %s228 = sphi 0, %s227
    %s244 = sphi 0, %s228
  $region4: #{ctc_block_forward.1} parent=0 // loop_header_branch
    %17 = sbr.rel (%p15) target = $region8
  $region5: #{ctc_block_forward.1} parent=0 // loop_body
    %s19 = ssub.s32 %s14, 1
    %s20 = ssub.s32 %s14, 2
    %s27 = sadd.s32 1, %s22
    %p28 = scmp.ge.s32.totalorder %s27, 4
    %s29 = scalar_select %p28, 0, %s27
    %s30 = sadd.s32 1, %s21
    %s31 = scalar_select %p28, %s30, %s21
    %p32 = scmp.ge.s32.totalorder %s31, 2
    %s33 = scalar_select %p32, 0, %s31
    %s34 = ssub.s32 %s21, %s33
    %s35 = ssub.s32 %s22, %s29
    %s36 = sor.u32 %s34, %s35
    %p37 = scmp.eq.s32.totalorder %s36, 0
    %s39 = sadd.s32 %s38, 1
    %s40 = scalar_select %p37, %s38, %s39
    %p43 = pneg %p37
    %p44 = scmp.eq.s32.totalorder %s14, 7
    %p45 = por %p43, %p44
    %p46 = scmp.ne.s32.totalorder %s38, %s41
    %p47 = scmp.eq.s32.totalorder %s14, 0
    %p48 = por %p46, %p47
    %p49 = scmp.ne.s32.totalorder %s38, %s41
    %p50 = scmp.eq.s32.totalorder %s19, 7
    %p51 = por %p49, %p50
    %p52 = scmp.ne.s32.totalorder %s41, %s42
    %p53 = scmp.eq.s32.totalorder %s19, 0
    %p54 = por %p52, %p53
    %p55 = scmp.ne.s32.totalorder %s41, %s42
    %p56 = scmp.eq.s32.totalorder %s20, 7
    %p57 = por %p55, %p56
    %p59 = scmp.ne.s32.totalorder %s42, %s58
    %p60 = scmp.eq.s32.totalorder %s20, 0
    %p61 = por %p59, %p60
    %s62 = sadd.s32 %s22, 1
    %s63 = smul.u32 %s62, 4
    %s64 = sadd.s32 %s29, 1
    %s65 = smul.u32 %s64, 4
    %s66 = ssub.s32 %s21, %s33
    %s67 = ssub.s32 %s63, %s65
    %s68 = sor.u32 %s66, %s67
    %p69 = scmp.eq.s32.totalorder %s68, 0
    %s71 = sadd.s32 %s70, 1
    %s72 = scalar_select %p69, %s70, %s71
    %p75 = pneg %p69
    %p76 = scmp.eq.s32.totalorder %s14, 7
    %p77 = por %p75, %p76
    %p78 = scmp.ne.s32.totalorder %s70, %s73
    %p79 = scmp.eq.s32.totalorder %s14, 0
    %p80 = por %p78, %p79
    %p81 = scmp.ne.s32.totalorder %s70, %s73
    %p82 = scmp.eq.s32.totalorder %s19, 7
    %p83 = por %p81, %p82
    %p84 = scmp.ne.s32.totalorder %s73, %s74
    %p85 = scmp.eq.s32.totalorder %s19, 0
    %p86 = por %p84, %p85
    %p87 = scmp.ne.s32.totalorder %s73, %s74
    %p88 = scmp.eq.s32.totalorder %s20, 7
    %p89 = por %p87, %p88
    %p91 = scmp.ne.s32.totalorder %s74, %s90
    %p92 = scmp.eq.s32.totalorder %s20, 0
    %p93 = por %p91, %p92
    %s95 = sadd.s32 %s94, 1
    %p98 = scmp.eq.s32.totalorder %s14, 7
    %p99 = scmp.ne.s32.totalorder %s94, %s96
    %p100 = scmp.eq.s32.totalorder %s14, 0
    %p101 = por %p99, %p100
    %p102 = scmp.ne.s32.totalorder %s94, %s96
    %p103 = scmp.eq.s32.totalorder %s19, 7
    %p104 = por %p102, %p103
    %p105 = scmp.ne.s32.totalorder %s96, %s97
    %p106 = scmp.eq.s32.totalorder %s19, 0
    %p107 = por %p105, %p106
    %p108 = scmp.ne.s32.totalorder %s96, %s97
    %p109 = scmp.eq.s32.totalorder %s20, 7
    %p110 = por %p108, %p109
    %p112 = scmp.ne.s32.totalorder %s97, %s111
    %p113 = scmp.eq.s32.totalorder %s20, 0
    %p114 = por %p112, %p113
    %s116 = sadd.s32 %s115, 1
    %p119 = scmp.eq.s32.totalorder %s14, 7
    %p120 = scmp.ne.s32.totalorder %s115, %s117
    %p121 = scmp.eq.s32.totalorder %s14, 0
    %p122 = por %p120, %p121
    %p123 = scmp.ne.s32.totalorder %s115, %s117
    %p124 = scmp.eq.s32.totalorder %s19, 7
    %p125 = por %p123, %p124
    %p126 = scmp.ne.s32.totalorder %s117, %s118
    %p127 = scmp.eq.s32.totalorder %s19, 0
    %p128 = por %p126, %p127
    %p129 = scmp.ne.s32.totalorder %s117, %s118
    %p130 = scmp.eq.s32.totalorder %s20, 7
    %p131 = por %p129, %p130
    %p133 = scmp.ne.s32.totalorder %s118, %s132
    %p134 = scmp.eq.s32.totalorder %s20, 0
    %p135 = por %p133, %p134
    %s137 = sadd.s32 %s136, 1
    %p140 = scmp.eq.s32.totalorder %s14, 7
    %p141 = scmp.ne.s32.totalorder %s136, %s138
    %p142 = scmp.eq.s32.totalorder %s14, 0
    %p143 = por %p141, %p142
    %p144 = scmp.ne.s32.totalorder %s136, %s138
    %p145 = scmp.eq.s32.totalorder %s19, 7
    %p146 = por %p144, %p145
    %p147 = scmp.ne.s32.totalorder %s138, %s139
    %p148 = scmp.eq.s32.totalorder %s19, 0
    %p149 = por %p147, %p148
    %p150 = scmp.ne.s32.totalorder %s138, %s139
    %p151 = scmp.eq.s32.totalorder %s20, 7
    %p152 = por %p150, %p151
    %p154 = scmp.ne.s32.totalorder %s139, %s153
    %p155 = scmp.eq.s32.totalorder %s20, 0
    %p156 = por %p154, %p155
    %s158 = sadd.s32 %s157, 1
    %p161 = scmp.eq.s32.totalorder %s14, 7
    %p162 = scmp.ne.s32.totalorder %s157, %s159
    %p163 = scmp.eq.s32.totalorder %s14, 0
    %p164 = por %p162, %p163
    %p165 = scmp.ne.s32.totalorder %s157, %s159
    %p166 = scmp.eq.s32.totalorder %s19, 7
    %p167 = por %p165, %p166
    %p168 = scmp.ne.s32.totalorder %s159, %s160
    %p169 = scmp.eq.s32.totalorder %s19, 0
    %p170 = por %p168, %p169
    %p171 = scmp.ne.s32.totalorder %s159, %s160
    %p172 = scmp.eq.s32.totalorder %s20, 7
    %p173 = por %p171, %p172
    %p175 = scmp.ne.s32.totalorder %s160, %s174
    %p176 = scmp.eq.s32.totalorder %s20, 0
    %p177 = por %p175, %p176
    %s179 = sadd.s32 %s178, 1
    %p182 = scmp.eq.s32.totalorder %s14, 7
    %p183 = scmp.ne.s32.totalorder %s178, %s180
    %p184 = scmp.eq.s32.totalorder %s14, 0
    %p185 = por %p183, %p184
    %p186 = scmp.ne.s32.totalorder %s178, %s180
    %p187 = scmp.eq.s32.totalorder %s19, 7
    %p188 = por %p186, %p187
    %p189 = scmp.ne.s32.totalorder %s180, %s181
    %p190 = scmp.eq.s32.totalorder %s19, 0
    %p191 = por %p189, %p190
    %p192 = scmp.ne.s32.totalorder %s180, %s181
    %p193 = scmp.eq.s32.totalorder %s20, 7
    %p194 = por %p192, %p193
    %p196 = scmp.ne.s32.totalorder %s181, %s195
    %p197 = scmp.eq.s32.totalorder %s20, 0
    %p198 = por %p196, %p197
    %s200 = sadd.s32 %s199, 1
    %p203 = scmp.eq.s32.totalorder %s14, 7
    %p204 = scmp.ne.s32.totalorder %s199, %s201
    %p205 = scmp.eq.s32.totalorder %s14, 0
    %p206 = por %p204, %p205
    %p207 = scmp.ne.s32.totalorder %s199, %s201
    %p208 = scmp.eq.s32.totalorder %s19, 7
    %p209 = por %p207, %p208
    %p210 = scmp.ne.s32.totalorder %s201, %s202
    %p211 = scmp.eq.s32.totalorder %s19, 0
    %p212 = por %p210, %p211
    %p213 = scmp.ne.s32.totalorder %s201, %s202
    %p214 = scmp.eq.s32.totalorder %s20, 7
    %p215 = por %p213, %p214
    %p217 = scmp.ne.s32.totalorder %s202, %s216
    %p218 = scmp.eq.s32.totalorder %s20, 0
    %p219 = por %p217, %p218
    %s220 = ssub.s32 %s21, %s33
    %s221 = ssub.s32 %s22, %s29
    %s222 = sor.u32 %s220, %s221
    %p223 = scmp.eq.s32.totalorder %s222, 0
    %s225 = sadd.s32 %s224, 1
    %s226 = scalar_select %p223, %s224, %s225
    %p229 = pneg %p223
    %p230 = scmp.eq.s32.totalorder %s14, 7
    %p231 = por %p229, %p230
    %p232 = scmp.ne.s32.totalorder %s224, %s227
    %p233 = scmp.eq.s32.totalorder %s14, 0
    %p234 = por %p232, %p233
    %p235 = scmp.ne.s32.totalorder %s224, %s227
    %p236 = scmp.eq.s32.totalorder %s19, 7
    %p237 = por %p235, %p236
    %p238 = scmp.ne.s32.totalorder %s227, %s228
    %p239 = scmp.eq.s32.totalorder %s19, 0
    %p240 = por %p238, %p239
    %p241 = scmp.ne.s32.totalorder %s227, %s228
    %p242 = scmp.eq.s32.totalorder %s20, 7
    %p243 = por %p241, %p242
    %p245 = scmp.ne.s32.totalorder %s228, %s244
    %p246 = scmp.eq.s32.totalorder %s20, 0
    %p247 = por %p245, %p246
    %p248 = scmp.le.s32.totalorder 1, %s14
    %p249 = scmp.lt.s32.totalorder %s14, 9
    %p250 = pnand %p248, %p249
    %p251 = pneg %p250
    // Predicated region
    $region9: #{ctc_block_forward.1} parent=5 // pred_check
      _
    $region10: #{ctc_block_forward.1} parent=5 // pred_check_branch
      %253 = sbr.rel (%p250) target = $region12
    $region11: #{ctc_block_forward.1} parent=5 // pred_region
      %s254 = ssub.s32 %s14, 1
      // Predicated region
      $region13: #{ctc_block_forward.1} parent=11 // pred_check
        %p255 = pneg %p107
      $region14: #{ctc_block_forward.1} parent=11 // pred_check_branch
        %257 = sbr.rel (%p255) target = $region16
      $region15: #{ctc_block_forward.1} parent=11 // pred_region
        _
      $region16: #{ctc_block_forward.1} parent=11 // pred_fallthru
        _
      // Predicated region
      $region17: #{ctc_block_forward.1} parent=11 // pred_check
        %p258 = pneg %p128
      $region18: #{ctc_block_forward.1} parent=11 // pred_check_branch
        %260 = sbr.rel (%p258) target = $region20
      $region19: #{ctc_block_forward.1} parent=11 // pred_region
        _
      $region20: #{ctc_block_forward.1} parent=11 // pred_fallthru
        _
      // Predicated region
      $region21: #{ctc_block_forward.1} parent=11 // pred_check
        %p261 = pneg %p149
      $region22: #{ctc_block_forward.1} parent=11 // pred_check_branch
        %263 = sbr.rel (%p261) target = $region24
      $region23: #{ctc_block_forward.1} parent=11 // pred_region
        _
      $region24: #{ctc_block_forward.1} parent=11 // pred_fallthru
        _
      // Predicated region
      $region25: #{ctc_block_forward.1} parent=11 // pred_check
        %p264 = pneg %p170
      $region26: #{ctc_block_forward.1} parent=11 // pred_check_branch
        %266 = sbr.rel (%p264) target = $region28
      $region27: #{ctc_block_forward.1} parent=11 // pred_region
        _
      $region28: #{ctc_block_forward.1} parent=11 // pred_fallthru
        _
      // Predicated region
      $region29: #{ctc_block_forward.1} parent=11 // pred_check
        %p267 = pneg %p191
      $region30: #{ctc_block_forward.1} parent=11 // pred_check_branch
        %269 = sbr.rel (%p267) target = $region32
      $region31: #{ctc_block_forward.1} parent=11 // pred_region
        _
      $region32: #{ctc_block_forward.1} parent=11 // pred_fallthru
        _
      // Predicated region
      $region33: #{ctc_block_forward.1} parent=11 // pred_check
        %p270 = pneg %p212
      $region34: #{ctc_block_forward.1} parent=11 // pred_check_branch
        %272 = sbr.rel (%p270) target = $region36
      $region35: #{ctc_block_forward.1} parent=11 // pred_region
        _
      $region36: #{ctc_block_forward.1} parent=11 // pred_fallthru
        _
    $region12: #{ctc_block_forward.1} parent=5 // pred_fallthru
      _
    %p273 = scmp.lt.s32.totalorder %s14, 8
    // Predicated region
    $region37: #{ctc_block_forward.1} parent=5 // pred_check
      %p274 = pneg %p273
    $region38: #{ctc_block_forward.1} parent=5 // pred_check_branch
      %276 = sbr.rel (%p274) target = $region40
    $region39: #{ctc_block_forward.1} parent=5 // pred_region
      // Predicated region
      $region41: #{ctc_block_forward.1} parent=39 // pred_check
        %p277 = pneg %p48
      $region42: #{ctc_block_forward.1} parent=39 // pred_check_branch
        %279 = sbr.rel (%p277) target = $region44
      $region43: #{ctc_block_forward.1} parent=39 // pred_region
        %s280 = smul.u32 4, %s22
        %s281 = ssub.s32 17, %s280
        %p282 = scmp.lt.s32.totalorder %s281, 4
        %s283 = scalar_select %p282, %s281, 4
        %s284 = smul.u32 8, %s283
        %s285 = smul.u32 %s284, 2
        %p286 = scmp.lt.s32.totalorder %s21, 1
        %s287 = scalar_select %p286, %s21, 1
        %p288 = scmp.lt.s32.totalorder %s280, 16
        %s289 = scalar_select %p288, %s280, 16
        %s290 = smul.addr %s289, 2
        %s291 = smul.addr %s287, 34
        %s292 = sadd.s32 %s290, %s291
        %s293 = smul.addr %s292, 8
        %s294 = scalar_lea.vmem %s0, %s293
        %s295 = smul.u32 4, %s22
        %s296 = ssub.s32 17, %s295
        %p297 = scmp.lt.s32.totalorder %s296, 4
        %s298 = scalar_select %p297, %s296, 4
        %s299 = smul.u32 8, %s298
        %s300 = smul.u32 %s299, 2
      $region44: #{ctc_block_forward.1} parent=39 // pred_fallthru
        _
      // Predicated region
      $region45: #{ctc_block_forward.1} parent=39 // pred_check
        %p301 = pneg %p80
      $region46: #{ctc_block_forward.1} parent=39 // pred_check_branch
        %303 = sbr.rel (%p301) target = $region48
      $region47: #{ctc_block_forward.1} parent=39 // pred_region
        %s304 = sadd.s32 %s22, 1
        %s305 = smul.u32 %s304, 4
        %p306 = scmp.lt.s32.totalorder %s21, 1
        %s307 = scalar_select %p306, %s21, 1
        %p308 = scmp.lt.s32.totalorder %s305, 16
        %s309 = scalar_select %p308, %s305, 16
        %s310 = smul.addr %s309, 2
        %s311 = smul.addr %s307, 34
        %s312 = sadd.s32 %s310, %s311
        %s313 = smul.addr %s312, 8
        %s314 = scalar_lea.vmem %s1, %s313
        %s315 = sadd.s32 %s22, 1
        %s316 = smul.u32 %s315, 4
      $region48: #{ctc_block_forward.1} parent=39 // pred_fallthru
        _
    $region40: #{ctc_block_forward.1} parent=5 // pred_fallthru
      _
    %p317 = scmp.le.s32.totalorder 1, %s14
    %p318 = scmp.lt.s32.totalorder %s14, 9
    %p319 = pnand %p317, %p318
    %p320 = pneg %p319
    // Predicated region
    $region49: #{ctc_block_forward.1} parent=5 // pred_check
      _
    $region50: #{ctc_block_forward.1} parent=5 // pred_check_branch
      %322 = sbr.rel (%p319) target = $region52
    $region51: #{ctc_block_forward.1} parent=5 // pred_region
      %s323 = ssub.s32 %s14, 1
      %s324 = smul.u32 4, %s24
      %s325 = ssub.s32 17, %s324
      %p326 = scmp.lt.s32.totalorder %s325, 4
      %s327 = scalar_select %p326, %s325, 4
      %s328 = smul.u32 8, %s327
      %s329 = smul.u32 %s328, 2
      %p330 = scmp.lt.s32.totalorder %s23, 1
      %s331 = scalar_select %p330, %s23, 1
      %p332 = scmp.lt.s32.totalorder %s324, 16
      %s333 = scalar_select %p332, %s324, 16
      %s334 = smul.addr %s333, 2
      %s335 = smul.addr %s331, 34
      %s336 = sadd.s32 %s334, %s335
      %s337 = smul.addr %s336, 8
      %s338 = scalar_lea.vmem %s0, %s337
      %p339 = pneg %p54
      %p340 = pneg %p51
      %s341 = sadd.s32 %s24, 1
      %s342 = smul.u32 %s341, 4
      %p343 = scmp.lt.s32.totalorder %s23, 1
      %s344 = scalar_select %p343, %s23, 1
      %p345 = scmp.lt.s32.totalorder %s342, 16
      %s346 = scalar_select %p345, %s342, 16
      %s347 = smul.addr %s346, 2
      %s348 = smul.addr %s344, 34
      %s349 = sadd.s32 %s347, %s348
      %s350 = smul.addr %s349, 8
      %s351 = scalar_lea.vmem %s1, %s350
      %p352 = pneg %p86
      %p353 = pneg %p83
      %p354 = pneg %p107
      %p355 = pneg %p104
      %p356 = pneg %p128
      %p357 = pneg %p125
      %p358 = pneg %p149
      %p359 = pneg %p146
      %p360 = pneg %p170
      %p361 = pneg %p167
      %p362 = pneg %p191
      %p363 = pneg %p188
      %p364 = pneg %p212
      %p365 = pneg %p209
      %p366 = pneg %p240
      %p367 = pneg %p237
      %s368 = smul.u32 2, %s24
      %p369 = scmp.lt.s32.totalorder %s23, 1
      %s370 = scalar_select %p369, %s23, 1
      %p371 = scmp.lt.s32.totalorder %s368, 7
      %s372 = scalar_select %p371, %s368, 7
      %s373 = smul.addr %s370, 8
      %s374 = sadd.s32 %s372, %s373
      %s375 = smul.addr %s374, 8
      %s376 = scalar_lea.vmem %s8, %s375
      %s377 = smul.u32 4, %s24
      %s378 = ssub.s32 17, %s377
      %p379 = scmp.lt.s32.totalorder %s378, 4
      %s380 = scalar_select %p379, %s378, 4
      %s381 = smul.u32 8, %s380
      %s382 = smul.u32 %s381, 2
      %p383 = scmp.lt.s32.totalorder %s23, 1
      %s384 = scalar_select %p383, %s23, 1
      %p385 = scmp.lt.s32.totalorder %s377, 16
      %s386 = scalar_select %p385, %s377, 16
      %s387 = smul.addr %s386, 2
      %s388 = smul.addr %s384, 34
      %s389 = sadd.s32 %s387, %s388
      %s390 = smul.addr %s389, 8
      %s391 = scalar_lea.vmem %s0, %s390
      %s392 = smul.u32 4, %s24
      %s393 = ssub.s32 17, %s392
      %p394 = scmp.lt.s32.totalorder %s393, 4
      %s395 = scalar_select %p394, %s393, 4
      %s396 = smul.u32 8, %s395
      %s397 = smul.u32 %s396, 2
      %s398 = sadd.s32 %s24, 1
      %s399 = smul.u32 %s398, 4
      %p400 = scmp.lt.s32.totalorder %s23, 1
      %s401 = scalar_select %p400, %s23, 1
      %p402 = scmp.lt.s32.totalorder %s399, 16
      %s403 = scalar_select %p402, %s399, 16
      %s404 = smul.addr %s403, 2
      %s405 = smul.addr %s401, 34
      %s406 = sadd.s32 %s404, %s405
      %s407 = smul.addr %s406, 8
      %s408 = scalar_lea.vmem %s1, %s407
      %s409 = sadd.s32 %s24, 1
      %s410 = smul.u32 %s409, 4
      %s411 = smul.u32 2, %s24
      %p412 = scmp.lt.s32.totalorder %s23, 1
      %s413 = scalar_select %p412, %s23, 1
      %p414 = scmp.lt.s32.totalorder %s411, 7
      %s415 = scalar_select %p414, %s411, 7
      %s416 = smul.addr %s413, 8
      %s417 = sadd.s32 %s415, %s416
      %s418 = smul.addr %s417, 8
      %s419 = scalar_lea.vmem %s8, %s418
      %s420 = smul.u32 2, %s24
      %v421 = vld [vmem:[%s391] sm:$0xff]
      %v422 = vld [vmem:[%s391 + $0x8] sm:$0xff]
      %v423 = vld [vmem:[%s391 + $0x10] sm:$0xff]
      %v424 = vld [vmem:[%s391 + $0x18] sm:$0xff]
      %v425 = vld [vmem:[%s391 + $0x20] sm:$0xff]
      %v426 = vld [vmem:[%s391 + $0x28] sm:$0xff]
      %v427 = vld [vmem:[%s391 + $0x30] sm:$0xff]
      %v428 = vld [vmem:[%s391 + $0x38] sm:$0xff]
      %429 = vst [vmem:[#allocation2] sm:$0xff] %v421
      %vm430 = vcmask 261120
      %431 = vst.msk [vmem:[#allocation2 + $0x8] sm:$0xff] %vm430, %v422
      %432 = vst [vmem:[#allocation2 + $0x10] sm:$0xff] %v423
      %433 = vst.msk [vmem:[#allocation2 + $0x18] sm:$0xff] %vm430, %v424
      %434 = vst [vmem:[#allocation2 + $0x20] sm:$0xff] %v425
      %435 = vst.msk [vmem:[#allocation2 + $0x28] sm:$0xff] %vm430, %v426
      %436 = vst [vmem:[#allocation2 + $0x30] sm:$0xff] %v427
      %437 = vst.msk [vmem:[#allocation2 + $0x38] sm:$0xff] %vm430, %v428
      %v438 = vld [vmem:[%s408] sm:$0xff]
      %v439 = vld [vmem:[%s408 + $0x8] sm:$0xff]
      %440 = vst [vmem:[#allocation2 + $0x40] sm:$0xff] %v438
      %441 = vst.msk [vmem:[#allocation2 + $0x48] sm:$0xff] %vm430, %v439
      %v442 = vld [vmem:[#allocation2] sm:$0xff]
      %v443 = vld [vmem:[#allocation2 + $0x8] sm:$0xff]
      %v444 = vld [vmem:[#allocation2 + $0x10] sm:$0xff]
      %v445 = vld [vmem:[#allocation2 + $0x18] sm:$0xff]
      %v446 = vld [vmem:[#allocation2 + $0x20] sm:$0xff]
      %v447 = vld [vmem:[#allocation2 + $0x28] sm:$0xff]
      %v448 = vld [vmem:[#allocation2 + $0x30] sm:$0xff]
      %v449 = vld [vmem:[#allocation2 + $0x38] sm:$0xff]
      %v450 = vld [vmem:[#allocation2 + $0x40] sm:$0x1]
      %v451 = vld [vmem:[#allocation2 + $0x48] sm:$0x1]
      %v452 = vld [vmem:[%s2] sm:$0xff]
      %v453 = vld [vmem:[%s2 + $0x8] sm:$0xff]
      %v454 = vld [vmem:[%s2 + $0x10] sm:$0xff]
      %v455 = vld [vmem:[%s2 + $0x18] sm:$0xff]
      %v456 = vld [vmem:[%s2 + $0x20] sm:$0xff]
      %v457 = vld [vmem:[%s2 + $0x28] sm:$0xff]
      %v458 = vld [vmem:[%s2 + $0x30] sm:$0xff]
      %v459 = vld [vmem:[%s2 + $0x38] sm:$0xff]
      %v460 = vld [vmem:[%s2 + $0x40] sm:$0xff]
      %v461 = vld [vmem:[%s2 + $0x48] sm:$0xff]
      %v462 = vld [vmem:[%s2 + $0x50] sm:$0xff]
      %v463 = vld [vmem:[%s2 + $0x58] sm:$0xff]
      %v464 = vld [vmem:[%s2 + $0x60] sm:$0xff]
      %v465 = vld [vmem:[%s2 + $0x68] sm:$0xff]
      %v466 = vld [vmem:[%s2 + $0x70] sm:$0xff]
      %v467 = vld [vmem:[%s2 + $0x78] sm:$0xff]
      %v468 = vld [vmem:[%s2 + $0x80] sm:$0xff]
      %v469 = vld [vmem:[%s2 + $0x88] sm:$0xff]
      %v470 = vld [vmem:[%s2 + $0x90] sm:$0xff]
      %v471 = vld [vmem:[%s2 + $0x98] sm:$0xff]
      %v472 = vld [vmem:[#allocation2] sm:$0xfe]
      %v473 = vld [vmem:[#allocation2 + $0x8] sm:$0xfe]
      %v474 = vld [vmem:[#allocation2 + $0x40] sm:$0x3]
      %v475 = vld [vmem:[#allocation2 + $0x48] sm:$0x3]
      %v476 = vld [vmem:[%s2 + $0xa0] sm:$0xff]
      %v477 = vld [vmem:[%s2 + $0xa8] sm:$0xff]
      %v478 = vld [vmem:[%s2 + $0xb0] sm:$0xff]
      %v479 = vld [vmem:[%s2 + $0xb8] sm:$0xff]
      %v480 = vld [vmem:[%s2 + $0xc0] sm:$0xff]
      %v481 = vld [vmem:[%s2 + $0xc8] sm:$0xff]
      %v482 = vld [vmem:[%s2 + $0xd0] sm:$0xff]
      %v483 = vld [vmem:[%s2 + $0xd8] sm:$0xff]
      %v484 = vld [vmem:[%s2 + $0xe0] sm:$0xff]
      %v485 = vld [vmem:[%s2 + $0xe8] sm:$0xff]
      %v486 = vld [vmem:[%s2 + $0xf0] sm:$0xff]
      %v487 = vld [vmem:[%s2 + $0xf8] sm:$0xff]
      %v488 = vld [vmem:[%s2 + $0x100] sm:$0xff]
      %v489 = vld [vmem:[%s2 + $0x108] sm:$0xff]
      %v490 = vld [vmem:[%s2 + $0x110] sm:$0xff]
      %v491 = vld [vmem:[%s2 + $0x118] sm:$0xff]
      %v492 = vld [vmem:[%s2 + $0x120] sm:$0xff]
      %v493 = vld [vmem:[%s2 + $0x128] sm:$0xff]
      %v494 = vld [vmem:[%s2 + $0x130] sm:$0xff]
      %v495 = vld [vmem:[%s2 + $0x138] sm:$0xff]
      %vm506 = vcmask 1046528
      %v507 = vrot.slane %v472, 1
      %v508 = vrot.slane %v444, 1
      %v509 = vsel %vm506, %v507, %v508
      %v510 = vrot.slane %v473, 1
      %v511 = vrot.slane %v445, 1
      %v512 = vsel %vm506, %v510, %v511
      %v513 = vrot.slane %v446, 1
      %v514 = vsel %vm506, %v508, %v513
      %v515 = vrot.slane %v447, 1
      %v516 = vsel %vm506, %v511, %v515
      %v517 = vrot.slane %v448, 1
      %v518 = vsel %vm506, %v513, %v517
      %v519 = vrot.slane %v449, 1
      %v520 = vsel %vm506, %v515, %v519
      %v521 = vrot.slane %v474, 1
      %v522 = vsel %vm506, %v517, %v521
      %v523 = vrot.slane %v475, 1
      %v524 = vsel %vm506, %v519, %v523
      %v530 = vsel %vm430, %v512, 0
      %v532 = vsel %vm430, %v516, 0
      %v534 = vsel %vm430, %v520, 0
      %v536 = vsel %vm430, %v524, 0
      %v538 = vsel %vm430, %v523, 0
      %540 = vmatpush.msra.mxu0 %v491
      %541 = vmatpush.msra.mxu0 %v490
      %542 = vmatpush.msra.mxu0 %v489
      %543 = vmatpush.msra.mxu0 %v488
      %544 = vmatpush.msra.mxu0 %v487
      %545 = vmatpush.msra.mxu0 %v486
      %546 = vmatpush.msra.mxu0 %v485
      %547 = vmatpush.msra.mxu0 %v484
      %548 = vmatpush.msra.mxu0 %v483
      %549 = vmatpush.msra.mxu0 %v482
      %550 = vmatpush.msra.mxu0 %v481
      %551 = vmatpush.msra.mxu0 %v480
      %552 = vmatpush.msra.mxu0 %v479
      %553 = vmatpush.msra.mxu0 %v478
      %554 = vmatpush.msra.mxu0 %v477
      %555 = vmatpush.msra.mxu0 %v476
      %556 = vmatmul.f32.gmra.mxu0 %v509
      %v557 = vpop.f32.mrf.mxu0
      %v558 = vadd.f32 0.0, %v557
      %559 = vmatmul.f32.gmra.mxu0 %v514
      %v560 = vpop.f32.mrf.mxu0
      %v561 = vadd.f32 0.0, %v560
      %562 = vmatmul.f32.gmra.mxu0 %v518
      %v563 = vpop.f32.mrf.mxu0
      %v564 = vadd.f32 0.0, %v563
      %565 = vmatmul.f32.gmra.mxu0 %v522
      %v566 = vpop.f32.mrf.mxu0
      %v567 = vadd.f32 0.0, %v566
      %568 = vmatmul.f32.gmra.mxu0 %v521
      %v569 = vpop.f32.mrf.mxu0
      %v570 = vadd.f32 0.0, %v569
      %571 = vdwg.mxu0
      %572 = vmatpush.msra.mxu0 0.0
      %573 = vmatpush.msra.mxu0 0.0
      %574 = vmatpush.msra.mxu0 0.0
      %575 = vmatpush.msra.mxu0 0.0
      %576 = vmatpush.msra.mxu0 0.0
      %577 = vmatpush.msra.mxu0 0.0
      %578 = vmatpush.msra.mxu0 0.0
      %579 = vmatpush.msra.mxu0 0.0
      %580 = vmatpush.msra.mxu0 0.0
      %581 = vmatpush.msra.mxu0 0.0
      %582 = vmatpush.msra.mxu0 0.0
      %583 = vmatpush.msra.mxu0 0.0
      %584 = vmatpush.msra.mxu0 %v495
      %585 = vmatpush.msra.mxu0 %v494
      %586 = vmatpush.msra.mxu0 %v493
      %587 = vmatpush.msra.mxu0 %v492
      %588 = vmatmul.f32.gmra.mxu0 %v530
      %v589 = vpop.f32.mrf.mxu0
      %v590 = vadd.f32 %v558, %v589
      %591 = vmatmul.f32.gmra.mxu0 %v532
      %v592 = vpop.f32.mrf.mxu0
      %v593 = vadd.f32 %v561, %v592
      %594 = vmatmul.f32.gmra.mxu0 %v534
      %v595 = vpop.f32.mrf.mxu0
      %v596 = vadd.f32 %v564, %v595
      %597 = vmatmul.f32.gmra.mxu0 %v536
      %v598 = vpop.f32.mrf.mxu0
      %v599 = vadd.f32 %v567, %v598
      %600 = vmatmul.f32.gmra.mxu0 %v538
      %v601 = vpop.f32.mrf.mxu0
      %v602 = vadd.f32 %v570, %v601
      %603 = vdwg.mxu0
      %v605 = vsel %vm430, %v443, 0
      %v607 = vsel %vm430, %v445, 0
      %v609 = vsel %vm430, %v447, 0
      %v611 = vsel %vm430, %v449, 0
      %v614 = vsel %vm430, %v451, 0
      %616 = vmatpush.msra.mxu0 %v467
      %617 = vmatpush.msra.mxu0 %v466
      %618 = vmatpush.msra.mxu0 %v465
      %619 = vmatpush.msra.mxu0 %v464
      %620 = vmatpush.msra.mxu0 %v463
      %621 = vmatpush.msra.mxu0 %v462
      %622 = vmatpush.msra.mxu0 %v461
      %623 = vmatpush.msra.mxu0 %v460
      %624 = vmatpush.msra.mxu0 %v459
      %625 = vmatpush.msra.mxu0 %v458
      %626 = vmatpush.msra.mxu0 %v457
      %627 = vmatpush.msra.mxu0 %v456
      %628 = vmatpush.msra.mxu0 %v455
      %629 = vmatpush.msra.mxu0 %v454
      %630 = vmatpush.msra.mxu0 %v453
      %631 = vmatpush.msra.mxu0 %v452
      %632 = vmatmul.f32.gmra.mxu0 %v442
      %v633 = vpop.f32.mrf.mxu0
      %v634 = vadd.f32 %v590, %v633
      %635 = vmatmul.f32.gmra.mxu0 %v444
      %v636 = vpop.f32.mrf.mxu0
      %v637 = vadd.f32 %v593, %v636
      %638 = vmatmul.f32.gmra.mxu0 %v446
      %v639 = vpop.f32.mrf.mxu0
      %v640 = vadd.f32 %v596, %v639
      %641 = vmatmul.f32.gmra.mxu0 %v448
      %v642 = vpop.f32.mrf.mxu0
      %v643 = vadd.f32 %v599, %v642
      %644 = vmatmul.f32.gmra.mxu0 %v450
      %v645 = vpop.f32.mrf.mxu0
      %v646 = vadd.f32 %v602, %v645
      %647 = vdwg.mxu0
      %648 = vmatpush.msra.mxu0 0.0
      %649 = vmatpush.msra.mxu0 0.0
      %650 = vmatpush.msra.mxu0 0.0
      %651 = vmatpush.msra.mxu0 0.0
      %652 = vmatpush.msra.mxu0 0.0
      %653 = vmatpush.msra.mxu0 0.0
      %654 = vmatpush.msra.mxu0 0.0
      %655 = vmatpush.msra.mxu0 0.0
      %656 = vmatpush.msra.mxu0 0.0
      %657 = vmatpush.msra.mxu0 0.0
      %658 = vmatpush.msra.mxu0 0.0
      %659 = vmatpush.msra.mxu0 0.0
      %660 = vmatpush.msra.mxu0 %v471
      %661 = vmatpush.msra.mxu0 %v470
      %662 = vmatpush.msra.mxu0 %v469
      %663 = vmatpush.msra.mxu0 %v468
      %664 = vmatmul.f32.gmra.mxu0 %v605
      %v665 = vpop.f32.mrf.mxu0
      %v666 = vadd.f32 %v634, %v665
      %667 = vmatmul.f32.gmra.mxu0 %v607
      %v668 = vpop.f32.mrf.mxu0
      %v669 = vadd.f32 %v637, %v668
      %670 = vmatmul.f32.gmra.mxu0 %v609
      %v671 = vpop.f32.mrf.mxu0
      %v672 = vadd.f32 %v640, %v671
      %673 = vmatmul.f32.gmra.mxu0 %v611
      %v674 = vpop.f32.mrf.mxu0
      %v675 = vadd.f32 %v643, %v674
      %676 = vmatmul.f32.gmra.mxu0 %v614
      %v677 = vpop.f32.mrf.mxu0
      %v678 = vadd.f32 %v646, %v677
      %679 = vdwg.mxu0
      %v680 = vld [vmem:[#allocation2] sm:$0xfc]
      %v681 = vld [vmem:[#allocation2 + $0x8] sm:$0xfc]
      %v682 = vld [vmem:[#allocation2 + $0x40] sm:$0x7]
      %v683 = vld [vmem:[#allocation2 + $0x48] sm:$0x7]
      %v684 = vld [vmem:[%s2 + $0x140] sm:$0xff]
      %v685 = vld [vmem:[%s2 + $0x148] sm:$0xff]
      %v686 = vld [vmem:[%s2 + $0x150] sm:$0xff]
      %v687 = vld [vmem:[%s2 + $0x158] sm:$0xff]
      %v688 = vld [vmem:[%s2 + $0x160] sm:$0xff]
      %v689 = vld [vmem:[%s2 + $0x168] sm:$0xff]
      %v690 = vld [vmem:[%s2 + $0x170] sm:$0xff]
      %v691 = vld [vmem:[%s2 + $0x178] sm:$0xff]
      %v692 = vld [vmem:[%s2 + $0x180] sm:$0xff]
      %v693 = vld [vmem:[%s2 + $0x188] sm:$0xff]
      %v694 = vld [vmem:[%s2 + $0x190] sm:$0xff]
      %v695 = vld [vmem:[%s2 + $0x198] sm:$0xff]
      %v696 = vld [vmem:[%s2 + $0x1a0] sm:$0xff]
      %v697 = vld [vmem:[%s2 + $0x1a8] sm:$0xff]
      %v698 = vld [vmem:[%s2 + $0x1b0] sm:$0xff]
      %v699 = vld [vmem:[%s2 + $0x1b8] sm:$0xff]
      %v700 = vld [vmem:[%s2 + $0x1c0] sm:$0xff]
      %v701 = vld [vmem:[%s2 + $0x1c8] sm:$0xff]
      %v702 = vld [vmem:[%s2 + $0x1d0] sm:$0xff]
      %v703 = vld [vmem:[%s2 + $0x1d8] sm:$0xff]
      %vm708 = vcmask 1045504
      %v709 = vrot.slane %v680, 2
      %v710 = vrot.slane %v444, 2
      %v711 = vsel %vm708, %v709, %v710
      %v712 = vrot.slane %v681, 2
      %v713 = vrot.slane %v445, 2
      %v714 = vsel %vm708, %v712, %v713
      %v715 = vrot.slane %v446, 2
      %v716 = vsel %vm708, %v710, %v715
      %v717 = vrot.slane %v447, 2
      %v718 = vsel %vm708, %v713, %v717
      %v719 = vrot.slane %v448, 2
      %v720 = vsel %vm708, %v715, %v719
      %v721 = vrot.slane %v449, 2
      %v722 = vsel %vm708, %v717, %v721
      %v723 = vrot.slane %v682, 2
      %v724 = vsel %vm708, %v719, %v723
      %v725 = vrot.slane %v683, 2
      %v726 = vsel %vm708, %v721, %v725
      %v732 = vsel %vm430, %v714, 0
      %v734 = vsel %vm430, %v718, 0
      %v736 = vsel %vm430, %v722, 0
      %v738 = vsel %vm430, %v726, 0
      %v740 = vsel %vm430, %v725, 0
      %742 = vmatpush.msra.mxu0 %v699
      %743 = vmatpush.msra.mxu0 %v698
      %744 = vmatpush.msra.mxu0 %v697
      %745 = vmatpush.msra.mxu0 %v696
      %746 = vmatpush.msra.mxu0 %v695
      %747 = vmatpush.msra.mxu0 %v694
      %748 = vmatpush.msra.mxu0 %v693
      %749 = vmatpush.msra.mxu0 %v692
      %750 = vmatpush.msra.mxu0 %v691
      %751 = vmatpush.msra.mxu0 %v690
      %752 = vmatpush.msra.mxu0 %v689
      %753 = vmatpush.msra.mxu0 %v688
      %754 = vmatpush.msra.mxu0 %v687
      %755 = vmatpush.msra.mxu0 %v686
      %756 = vmatpush.msra.mxu0 %v685
      %757 = vmatpush.msra.mxu0 %v684
      %758 = vmatmul.f32.gmra.mxu0 %v711
      %v759 = vpop.f32.mrf.mxu0
      %v760 = vadd.f32 0.0, %v759
      %761 = vmatmul.f32.gmra.mxu0 %v716
      %v762 = vpop.f32.mrf.mxu0
      %v763 = vadd.f32 0.0, %v762
      %764 = vmatmul.f32.gmra.mxu0 %v720
      %v765 = vpop.f32.mrf.mxu0
      %v766 = vadd.f32 0.0, %v765
      %767 = vmatmul.f32.gmra.mxu0 %v724
      %v768 = vpop.f32.mrf.mxu0
      %v769 = vadd.f32 0.0, %v768
      %770 = vmatmul.f32.gmra.mxu0 %v723
      %v771 = vpop.f32.mrf.mxu0
      %v772 = vadd.f32 0.0, %v771
      %773 = vdwg.mxu0
      %774 = vmatpush.msra.mxu0 0.0
      %775 = vmatpush.msra.mxu0 0.0
      %776 = vmatpush.msra.mxu0 0.0
      %777 = vmatpush.msra.mxu0 0.0
      %778 = vmatpush.msra.mxu0 0.0
      %779 = vmatpush.msra.mxu0 0.0
      %780 = vmatpush.msra.mxu0 0.0
      %781 = vmatpush.msra.mxu0 0.0
      %782 = vmatpush.msra.mxu0 0.0
      %783 = vmatpush.msra.mxu0 0.0
      %784 = vmatpush.msra.mxu0 0.0
      %785 = vmatpush.msra.mxu0 0.0
      %786 = vmatpush.msra.mxu0 %v703
      %787 = vmatpush.msra.mxu0 %v702
      %788 = vmatpush.msra.mxu0 %v701
      %789 = vmatpush.msra.mxu0 %v700
      %790 = vmatmul.f32.gmra.mxu0 %v732
      %v791 = vpop.f32.mrf.mxu0
      %v792 = vadd.f32 %v760, %v791
      %793 = vmatmul.f32.gmra.mxu0 %v734
      %v794 = vpop.f32.mrf.mxu0
      %v795 = vadd.f32 %v763, %v794
      %796 = vmatmul.f32.gmra.mxu0 %v736
      %v797 = vpop.f32.mrf.mxu0
      %v798 = vadd.f32 %v766, %v797
      %799 = vmatmul.f32.gmra.mxu0 %v738
      %v800 = vpop.f32.mrf.mxu0
      %v801 = vadd.f32 %v769, %v800
      %802 = vmatmul.f32.gmra.mxu0 %v740
      %v803 = vpop.f32.mrf.mxu0
      %v804 = vadd.f32 %v772, %v803
      %805 = vdwg.mxu0
      %v806 = vadd.f32 %v666, %v792
      %v807 = vadd.f32 %v669, %v795
      %v808 = vadd.f32 %v672, %v798
      %v809 = vadd.f32 %v675, %v801
      %v810 = vadd.f32 %v678, %v804
      %v811 = vld [vmem:[%s3] sm:$0x1]
      %v813 = vperm.slane %v811, 0
      %v815 = vadd.f32 %v806, %v813
      %v816 = vadd.f32 %v807, %v813
      %v817 = vadd.f32 %v808, %v813
      %v818 = vadd.f32 %v809, %v813
      %v819 = vadd.f32 %v810, %v813
      %s820 = smul.u32 %s24, 32
      %s821 = ssub.s32 %s820, 1
      %v822 = vlaneseq
      %v823 = vshrl.u32 %v822, 7
      %v824 = vadd.s32 %v823, 8
      %v825 = vadd.s32 %v823, 16
      %v826 = vadd.s32 %v823, 24
      %v827 = vadd.s32 %v823, 32
      %v828 = vstv %s821
      %v829 = vadd.s32 %v828, %v823
      %v830 = vadd.s32 %v828, %v824
      %v831 = vadd.s32 %v828, %v825
      %v832 = vadd.s32 %v828, %v826
      %v833 = vadd.s32 %v828, %v827
      %vm834 = vcmp.ge.s32.totalorder %v829, 0
      %vm835 = vcmp.ge.s32.totalorder %v830, 0
      %vm836 = vcmp.ge.s32.totalorder %v831, 0
      %vm837 = vcmp.ge.s32.totalorder %v832, 0
      %vm838 = vcmp.ge.s32.totalorder %v833, 0
      %vm839 = vcmp.lt.s32.totalorder %v829, 101
      %vm840 = vcmp.lt.s32.totalorder %v830, 101
      %vm841 = vcmp.lt.s32.totalorder %v831, 101
      %vm842 = vcmp.lt.s32.totalorder %v832, 101
      %vm843 = vcmp.lt.s32.totalorder %v833, 101
      %vm844 = vmand %vm834, %vm839
      %vm845 = vmand %vm835, %vm840
      %vm846 = vmand %vm836, %vm841
      %vm847 = vmand %vm837, %vm842
      %vm848 = vmand %vm838, %vm843
      %v849 = vsel %vm844, 1, 0
      %v850 = vsel %vm845, 1, 0
      %v851 = vsel %vm846, 1, 0
      %v852 = vsel %vm847, 1, 0
      %v853 = vsel %vm848, 1, 0
      %v854 = vcvt.s32.f32 %v849
      %v855 = vcvt.s32.f32 %v850
      %v856 = vcvt.s32.f32 %v851
      %v857 = vcvt.s32.f32 %v852
      %v858 = vcvt.s32.f32 %v853
      %v859 = vmul.f32 %v815, %v854
      %v860 = vmul.f32 %v816, %v855
      %v861 = vmul.f32 %v817, %v856
      %v862 = vmul.f32 %v818, %v857
      %v863 = vmul.f32 %v819, %v858
      %864 = vst.msk [vmem:[#allocation3] sm:$0xff] %vm430, %v859
      %865 = vst.msk [vmem:[#allocation3 + $0x8] sm:$0xff] %vm430, %v860
      %866 = vst.msk [vmem:[#allocation3 + $0x10] sm:$0xff] %vm430, %v861
      %867 = vst.msk [vmem:[#allocation3 + $0x18] sm:$0xff] %vm430, %v862
      %vm868 = vcmask 253952
      %869 = vst.msk [vmem:[#allocation3 + $0x20] sm:$0x1] %vm868, %v863
      %v870 = vld [vmem:[#allocation3] ss:$2 sm:$0xff]
      %s871 = scalar_lea.vmem [#allocation3], 16
      %v872 = vld [vmem:[%s871] ss:$2 sm:$0xff]
      %s873 = scalar_lea.vmem [#allocation3], 1
      %v874 = vld [vmem:[%s873] ss:$2 sm:$0xff]
      %s875 = scalar_lea.vmem [#allocation3], 17
      %v876 = vld [vmem:[%s875] ss:$2 sm:$0xff]
      %s877 = scalar_lea.vmem [#allocation3], 2
      %v878 = vld [vmem:[%s877] ss:$2 sm:$0xff]
      %s879 = scalar_lea.vmem [#allocation3], 18
      %v880 = vld [vmem:[%s879] ss:$2 sm:$0xff]
      %883 = vrot.lane.b32.xlu0 %v874, 32
      %v884 = vpop.permute.xlu0 %883
      %885 = vrot.lane.b32.xlu0 %v876, 32
      %v886 = vpop.permute.xlu0 %885
      %891 = vrot.lane.b32.xlu0 %v878, 64
      %v892 = vpop.permute.xlu0 %891
      %893 = vrot.lane.b32.xlu0 %v880, 64
      %v894 = vpop.permute.xlu0 %893
      %v897 = vsel %vm430, %v870, %v884
      %v898 = vsel %vm430, %v872, %v886
      %vm899 = vcmask 523264
      %v900 = vsel %vm899, %v897, %v892
      %v901 = vsel %vm899, %v898, %v894
      %v902 = vld [vmem:[%s4] sm:$0xff]
      %v903 = vld [vmem:[%s4 + $0x8] sm:$0xff]
      %v904 = vld [vmem:[%s4 + $0x10] sm:$0xff]
      %v905 = vld [vmem:[%s4 + $0x18] sm:$0xff]
      %v906 = vld [vmem:[%s4 + $0x20] sm:$0xff]
      %v907 = vld [vmem:[%s4 + $0x28] sm:$0xff]
      %v908 = vld [vmem:[%s4 + $0x30] sm:$0xff]
      %v909 = vld [vmem:[%s4 + $0x38] sm:$0xff]
      %v910 = vld [vmem:[%s4 + $0x40] sm:$0xff]
      %v911 = vld [vmem:[%s4 + $0x48] sm:$0xff]
      %v912 = vld [vmem:[%s4 + $0x50] sm:$0xff]
      %v913 = vld [vmem:[%s4 + $0x58] sm:$0xff]
      %v914 = vld [vmem:[%s5] sm:$0x1]
      %v916 = vperm.slane %v914, 0
      %vm918 = vcmask 785408
      %v920 = vsel %vm918, %v900, 0
      %v923 = vsel %vm918, %v901, 0
      %925 = vmatpush.msra.mxu0 0.0
      %926 = vmatpush.msra.mxu0 0.0
      %927 = vmatpush.msra.mxu0 0.0
      %928 = vmatpush.msra.mxu0 0.0
      %929 = vmatpush.msra.mxu0 %v913
      %930 = vmatpush.msra.mxu0 %v912
      %931 = vmatpush.msra.mxu0 %v911
      %932 = vmatpush.msra.mxu0 %v910
      %933 = vmatpush.msra.mxu0 %v909
      %934 = vmatpush.msra.mxu0 %v908
      %935 = vmatpush.msra.mxu0 %v907
      %936 = vmatpush.msra.mxu0 %v906
      %937 = vmatpush.msra.mxu0 %v905
      %938 = vmatpush.msra.mxu0 %v904
      %939 = vmatpush.msra.mxu0 %v903
      %940 = vmatpush.msra.mxu0 %v902
      %941 = vmatmul.f32.gmra.mxu0 %v920
      %v942 = vpop.f32.mrf.mxu0
      %v943 = vadd.f32 %v916, %v942
      %944 = vmatmul.f32.gmra.mxu0 %v923
      %v945 = vpop.f32.mrf.mxu0
      %v946 = vadd.f32 %v916, %v945
      %947 = vdwg.mxu0
      %v948 = vld [vmem:[%s6] sm:$0xff]
      %v949 = vld [vmem:[%s6 + $0x8] sm:$0xff]
      %v950 = vld [vmem:[%s6 + $0x10] sm:$0xff]
      %v951 = vld [vmem:[%s6 + $0x18] sm:$0xff]
      %v952 = vld [vmem:[%s7] sm:$0x1]
      %v954 = vperm.slane %v952, 0
      %v957 = vsel %vm430, %v943, 0
      %v960 = vsel %vm430, %v946, 0
      %962 = vmatpush.msra.mxu0 0.0
      %963 = vmatpush.msra.mxu0 0.0
      %964 = vmatpush.msra.mxu0 0.0
      %965 = vmatpush.msra.mxu0 0.0
      %966 = vmatpush.msra.mxu0 0.0
      %967 = vmatpush.msra.mxu0 0.0
      %968 = vmatpush.msra.mxu0 0.0
      %969 = vmatpush.msra.mxu0 0.0
      %970 = vmatpush.msra.mxu0 0.0
      %971 = vmatpush.msra.mxu0 0.0
      %972 = vmatpush.msra.mxu0 0.0
      %973 = vmatpush.msra.mxu0 0.0
      %974 = vmatpush.msra.mxu0 %v951
      %975 = vmatpush.msra.mxu0 %v950
      %976 = vmatpush.msra.mxu0 %v949
      %977 = vmatpush.msra.mxu0 %v948
      %978 = vmatmul.f32.gmra.mxu0 %v957
      %v979 = vpop.f32.mrf.mxu0
      %v980 = vadd.f32 %v954, %v979
      %981 = vmatmul.f32.gmra.mxu0 %v960
      %v982 = vpop.f32.mrf.mxu0
      %v983 = vadd.f32 %v954, %v982
      %984 = vdwg.mxu0
      %985 = vst [vmem:[%s419] sm:$0xff] %v980
      %986 = vst [vmem:[%s419 + $0x8] sm:$0xff] %v983
      %s987 = smul.u32 2, %s24
      %p988 = scmp.lt.s32.totalorder %s23, 1
      %s989 = scalar_select %p988, %s23, 1
      %p990 = scmp.lt.s32.totalorder %s987, 7
      %s991 = scalar_select %p990, %s987, 7
      %s992 = smul.addr %s989, 8
      %s993 = sadd.s32 %s991, %s992
      %s994 = smul.addr %s993, 8
      %s995 = scalar_lea.vmem %s8, %s994
      // Predicated region
      $region53: #{ctc_block_forward.1} parent=51 // pred_check
        %p996 = pneg %p237
      $region54: #{ctc_block_forward.1} parent=51 // pred_check_branch
        %998 = sbr.rel (%p996) target = $region56
      $region55: #{ctc_block_forward.1} parent=51 // pred_region
        %s999 = smul.u32 2, %s24
      $region56: #{ctc_block_forward.1} parent=51 // pred_fallthru
        _
    $region52: #{ctc_block_forward.1} parent=5 // pred_fallthru
      _
    %p1000 = scmp.le.s32.totalorder 2, %s14
    // Predicated region
    $region57: #{ctc_block_forward.1} parent=5 // pred_check
      %p1001 = pneg %p1000
    $region58: #{ctc_block_forward.1} parent=5 // pred_check_branch
      %1003 = sbr.rel (%p1001) target = $region60
    $region59: #{ctc_block_forward.1} parent=5 // pred_region
      %s1004 = ssub.s32 %s14, 2
      // Predicated region
      $region61: #{ctc_block_forward.1} parent=59 // pred_check
        %p1005 = pneg %p243
      $region62: #{ctc_block_forward.1} parent=59 // pred_check_branch
        %1007 = sbr.rel (%p1005) target = $region64
      $region63: #{ctc_block_forward.1} parent=59 // pred_region
        %s1008 = smul.u32 2, %s26
        %p1009 = scmp.lt.s32.totalorder %s25, 1
        %s1010 = scalar_select %p1009, %s25, 1
        %p1011 = scmp.lt.s32.totalorder %s1008, 7
        %s1012 = scalar_select %p1011, %s1008, 7
        %s1013 = smul.addr %s1010, 8
        %s1014 = sadd.s32 %s1012, %s1013
        %s1015 = smul.addr %s1014, 8
        %s1016 = scalar_lea.vmem %s8, %s1015
      $region64: #{ctc_block_forward.1} parent=59 // pred_fallthru
        _
    $region60: #{ctc_block_forward.1} parent=5 // pred_fallthru
      _
  $region6: #{ctc_block_forward.1} parent=0 // loop_footer
    %s18 = sadd.s32 1, %s14
  $region7: #{ctc_block_forward.1} parent=0 // loop_footer_branch
    %13 = sbr.rel target = $region3
  $region8: #{ctc_block_forward.1} parent=0 // loop_exit
    _

</llo_original>
